<compile_context>
chip_gen: v7x
topology: tpu7x:2x2x1
jax: 0.10.0
libtpu: 0.0.40
codegen_flags: <defaults>
</compile_context>

<pallas_src>
import functools

import jax
import jax.numpy as jnp
from jax import lax
from jax.experimental import pallas as pl
from jax.experimental.pallas import tpu as pltpu


_LANE = 128


def _round_up(x, m):
    return (x + m - 1) // m * m


def _vmem_budgets():
    """Chip-aware scoped-VMEM limit and single-pass footprint budget."""
    cap = None
    try:
        cap = int(pltpu.get_tpu_info().vmem_capacity_bytes)
    except Exception:
        cap = None
    if not cap or cap <= 0:
        cap = 64 * 1024 * 1024          # conservative: v7x per-TensorCore VMEM
    vmem_limit = min(cap * 3 // 4, 100 * 1024 * 1024)   # 96 MiB v5e/v6e, 48 MiB v7x
    vmem_limit = max(vmem_limit, 32 * 1024 * 1024)
    single_budget = min(cap // 2, 72 * 1024 * 1024)      # 64 MiB v5e/v6e, 32 MiB v7x
    single_budget = max(single_budget, 16 * 1024 * 1024)
    return vmem_limit, single_budget


def _pick_tile_c(c):
    """Channel tile: lane-dense divisor <= 512 when possible, else full C."""
    if c % _LANE == 0:
        for t in (512, 384, 256, 128):
            if c % t == 0:
                return t
    return c            # full-extent channel block (legal; masked stores only)


# --------------------- single-call path (moderate N) ------------------------
# Full node axis resident per channel tile; grid pipelines over C tiles.
# One read + one write of x.

def _bn_fused_kernel(x_ref, gamma_ref, beta_ref, o_ref, *, eps):
    x = x_ref[...].astype(jnp.float32)                           # [N, tile_c]
    mean = jnp.mean(x, axis=0, keepdims=True)                    # [1, tile_c]
    var = jnp.mean(jnp.square(x - mean), axis=0, keepdims=True)  # biased var
    scale = gamma_ref[...] * lax.rsqrt(var + eps)                # gamma*inv_std
    shift = beta_ref[...] - mean * scale
    # Shift-form affine: only x stays live on the write path (1 mul + 1 add).
    o_ref[...] = (x * scale + shift).astype(o_ref.dtype)


def _bn_single_pass(x, gamma2d, beta2d, eps, tile_c, vmem_limit):
    n, c = x.shape
    grid_c = c // tile_c
    return pl.pallas_call(
        functools.partial(_bn_fused_kernel, eps=eps),
        out_shape=jax.ShapeDtypeStruct((n, c), x.dtype),
        grid=(grid_c,),
        in_specs=[
            pl.BlockSpec((n, tile_c), lambda ci: (0, ci)),
            pl.BlockSpec((1, tile_c), lambda ci: (0, ci)),
            pl.BlockSpec((1, tile_c), lambda ci: (0, ci)),
        ],
        out_specs=pl.BlockSpec((n, tile_c), lambda ci: (0, ci)),
        compiler_params=pltpu.CompilerParams(
            dimension_semantics=("parallel",),
            vmem_limit_bytes=vmem_limit,
        ),
    )(x, gamma2d, beta2d)


# ------------------------ two-pass path (large N) ---------------------------
# Pass 1: stream N tiles, accumulate pivot-centered per-channel sum / sumsq in
#         an (8, tile_c) sublane-aligned accumulator held in the output block.
# Finalize (tiny, plain JAX): combine partials, compute scale/shift.
# Pass 2: elementwise y = x * scale + shift with a fully parallel grid.

def _bn_stats_kernel(x_ref, pivot_ref, sum_ref, ssq_ref, *,
                     tile_n, grid_n_inner, valid_last_rows):
    s = pl.program_id(0)          # N-split (v7x dual-core)
    k = pl.program_id(2)          # inner N tile (reduction axis, last)

    @pl.when(k == 0)
    def _():
        sum_ref[...] = jnp.zeros_like(sum_ref)
        ssq_ref[...] = jnp.zeros_like(ssq_ref)

    # Pivot-centered accumulation keeps E[x^2] - mean^2 numerically safe.
    x = x_ref[...].astype(jnp.float32) - pivot_ref[...]          # [tile_n, tile_c]

    def _accum(xv):
        # (tile_n//8, 8, tile_c): per-step reduction is pure vreg-wise adds;
        # the cross-sublane collapse happens once, in the JAX finalize.
        x3 = xv.reshape(tile_n // 8, 8, xv.shape[-1])
        sum_ref[...] += jnp.sum(x3, axis=0)
        ssq_ref[...] += jnp.sum(x3 * x3, axis=0)

    if valid_last_rows == tile_n:
        _accum(x)                                   # N divides evenly: no mask
    else:
        is_last = jnp.logical_and(s == pl.num_programs(0) - 1,
                                  k == pl.num_programs(2) - 1)

        @pl.when(jnp.logical_not(is_last))
        def _():
            _accum(x)                               # full tiles: unmasked

        @pl.when(is_last)
        def _():                                    # only the ragged last tile
            row = lax.broadcasted_iota(jnp.int32, x.shape, 0)
            _accum(jnp.where(row < valid_last_rows, x, 0.0))


def _bn_apply_kernel(x_ref, scale_ref, shift_ref, o_ref):
    o_ref[...] = (x_ref[...].astype(jnp.float32) * scale_ref[...]
                  + shift_ref[...]).astype(o_ref.dtype)


def _bn_two_pass(x, gamma2d, beta2d, eps, tile_c, tile_n, vmem_limit):
    n, c = x.shape
    itemsize = jnp.dtype(x.dtype).itemsize
    grid_c = c // tile_c

    # Cap tile_n so a double-buffered in/out block (+ f32 temps) stays modest.
    row_bytes = tile_c * (4 * itemsize + 8)
    tn = min(tile_n, max(8, (vmem_limit // 4) // max(row_bytes, 1)))
    tn = max(8, (tn // 8) * 8)
    tn = min(tn, _round_up(n, 8))

    grid_n = pl.cdiv(n, tn)
    valid_last_rows = n - (grid_n - 1) * tn

    # v7x: split the N-tile range across both TensorCores when the channel
    # axis offers no parallelism.  No-op loss on 1-TC chips.
    n_split = 2 if (grid_c == 1 and grid_n >= 2 and grid_n % 2 == 0) else 1
    grid_n_inner = grid_n // n_split

    pivot = x[0:1, :].astype(jnp.float32)           # [1, C] per-channel pivot

    psum, pssq = pl.pallas_call(
        functools.partial(_bn_stats_kernel, tile_n=tn,
                          grid_n_inner=grid_n_inner,
                          valid_last_rows=valid_last_rows),
        out_shape=(jax.ShapeDtypeStruct((n_split * 8, c), jnp.float32),
                   jax.ShapeDtypeStruct((n_split * 8, c), jnp.float32)),
        grid=(n_split, grid_c, grid_n_inner),
        in_specs=[
            pl.BlockSpec((tn, tile_c),
                         lambda s, ci, k: (s * grid_n_inner + k, ci)),
            pl.BlockSpec((1, tile_c), lambda s, ci, k: (0, ci)),
        ],
        out_specs=(
            pl.BlockSpec((8, tile_c), lambda s, ci, k: (s, ci)),
            pl.BlockSpec((8, tile_c), lambda s, ci, k: (s, ci)),
        ),
        compiler_params=pltpu.CompilerParams(
            dimension_semantics=("parallel", "parallel", "arbitrary"),
            vmem_limit_bytes=vmem_limit,
        ),
    )(x, pivot)

    # Tiny [C]-sized finalize in plain JAX (combines sublane rows and splits).
    total_sum = jnp.sum(psum, axis=0, keepdims=True)
    total_ssq = jnp.sum(pssq, axis=0, keepdims=True)
    mean_c = total_sum / n
    var = jnp.maximum(total_ssq / n - mean_c * mean_c, 0.0)
    mean = pivot + mean_c
    scale = gamma2d * lax.rsqrt(var + eps)
    shift = beta2d - mean * scale

    return pl.pallas_call(
        _bn_apply_kernel,
        out_shape=jax.ShapeDtypeStruct((n, c), x.dtype),
        grid=(grid_c, grid_n),
        in_specs=[
            pl.BlockSpec((tn, tile_c), lambda ci, k: (k, ci)),
            pl.BlockSpec((1, tile_c), lambda ci, k: (0, ci)),
            pl.BlockSpec((1, tile_c), lambda ci, k: (0, ci)),
        ],
        out_specs=pl.BlockSpec((tn, tile_c), lambda ci, k: (k, ci)),
        compiler_params=pltpu.CompilerParams(
            dimension_semantics=("parallel", "parallel"),
            vmem_limit_bytes=vmem_limit,
        ),
    )(x, scale, shift)


# --------------------------------- wrapper ----------------------------------

def batch_norm(x, gamma, beta, eps=1e-5, *, tile_n=1024, force_two_pass=False):
    """BatchNorm1d forward with training-mode batch statistics over [N, C]."""
    n, c = x.shape
    assert gamma.shape == (c,) and beta.shape == (c,)

    vmem_limit, single_budget = _vmem_budgets()
    tile_c = _pick_tile_c(c)

    gamma2d = gamma.reshape(1, c).astype(jnp.float32)
    beta2d = beta.reshape(1, c).astype(jnp.float32)

    # Estimated per-C-tile VMEM for the fused path: double-buffered in + out
    # column blocks plus ~2 f32 temporaries of the same footprint.
    itemsize = jnp.dtype(x.dtype).itemsize
    single_pass_bytes = n * tile_c * (4 * itemsize + 8)
    use_two_pass = force_two_pass or single_pass_bytes > single_budget

    if use_two_pass:
        return _bn_two_pass(x, gamma2d, beta2d, eps, tile_c, tile_n, vmem_limit)
    return _bn_single_pass(x, gamma2d, beta2d, eps, tile_c, vmem_limit)


if __name__ == "__main__":
    key = jax.random.PRNGKey(0)

    def ref_bn(x, gamma, beta, eps=1e-5):
        mean = jnp.mean(x, axis=0, keepdims=True)
        var = jnp.mean((x - mean) ** 2, axis=0, keepdims=True)
        return (x - mean) / jnp.sqrt(var + eps) * gamma[None, :] + beta[None, :]

    k1, k2, k3, k4 = jax.random.split(key, 4)

    # Case 1: small graph, C=32 (not a multiple of 128) -> single fused kernel
    # with a full-C block; no HBM padding or slicing.
    N1, C1 = 64, 32
    x1 = jax.random.normal(k1, (N1, C1), jnp.float32) * 3.0 + 5.0
    g1 = jnp.ones((C1,), jnp.float32)       # PyTorch default init
    b1 = jnp.zeros((C1,), jnp.float32)
    o1 = jax.block_until_ready(batch_norm(x1, g1, b1, eps=1e-5))
    assert jnp.allclose(o1, ref_bn(x1, g1, b1), atol=1e-4, rtol=1e-4), \
        "single-pass (full-C block) mismatch vs reference"

    # Case 2: forced two-pass: split stats grid (n_split=2), pivot-centered
    # sums, ragged last N tile (8 valid rows).
    N2, C2 = 200, 32
    x2 = jax.random.normal(k2, (N2, C2), jnp.float32) * 2.0 + 10.0
    g2 = jnp.full((C2,), 0.5, jnp.float32)
    b2 = jnp.full((C2,), -0.25, jnp.float32)
    o2 = jax.block_until_ready(
        batch_norm(x2, g2, b2, eps=1e-5, force_two_pass=True, tile_n=64))
    assert jnp.allclose(o2, ref_bn(x2, g2, b2), atol=1e-4, rtol=1e-4), \
        "two-pass (split + ragged) mismatch vs reference"

    # Case 3: lane-dense channel tiling (C multiple of 128 -> tile_c=512,
    # grid_c=2) on the fused single-pass path.
    N3, C3 = 48, 1024
    x3 = jax.random.normal(k3, (N3, C3), jnp.float32)
    g3 = jax.random.normal(k4, (C3,), jnp.float32) * 0.1 + 1.0
    b3 = jax.random.normal(k4, (C3,), jnp.float32) * 0.1
    o3 = jax.block_until_ready(batch_norm(x3, g3, b3, eps=1e-5))
    assert jnp.allclose(o3, ref_bn(x3, g3, b3), atol=1e-4, rtol=1e-4), \
        "single-pass (tiled C) mismatch vs reference"

    # Case 4: two-pass with channel tiling (grid_c=2), odd grid_n (no split),
    # ragged last N tile.
    N4, C4 = 80, 1024
    x4 = jax.random.normal(k2, (N4, C4), jnp.float32) + 4.0
    g4 = jnp.full((C4,), 1.5, jnp.float32)
    b4 = jnp.full((C4,), 0.3, jnp.float32)
    o4 = jax.block_until_ready(
        batch_norm(x4, g4, b4, eps=1e-5, force_two_pass=True, tile_n=32))
    assert jnp.allclose(o4, ref_bn(x4, g4, b4), atol=1e-4, rtol=1e-4), \
        "two-pass (tiled C) mismatch vs reference"

    print("KERNEL_OK")
</pallas_src>

<mosaic_0001>
module attributes {stable_mosaic.version = 11 : i64} {
  func.func @_bn_fused_kernel(%arg0: i32, %arg1: memref<64x32xf32, #tpu.memory_space<vmem>>, %arg2: memref<1x32xf32, #tpu.memory_space<vmem>>, %arg3: memref<1x32xf32, #tpu.memory_space<vmem>>, %arg4: memref<64x32xf32, #tpu.memory_space<vmem>>) attributes {dimension_semantics = [#tpu.dimension_semantics<parallel>], iteration_bounds = array<i64: 1>, scalar_prefetch = 0 : i64, scratch_operands = 0 : i64, tpu.core_type = #tpu.core_type<tc>, window_params = [{transform_indices = @transform_0, window_bounds = array<i64: 64, 32>}, {transform_indices = @transform_1, window_bounds = array<i64: 1, 32>}, {transform_indices = @transform_2, window_bounds = array<i64: 1, 32>}, {transform_indices = @transform_3, window_bounds = array<i64: 64, 32>}]} {
    %c0 = arith.constant 0 : index
    %c0_0 = arith.constant 0 : index
    %0 = vector.load %arg1[%c0, %c0_0] : memref<64x32xf32, #tpu.memory_space<vmem>>, vector<64x32xf32>
    %cst = arith.constant dense<0.000000e+00> : vector<32xf32>
    %1 = vector.multi_reduction <add>, %0, %cst [0] : vector<64x32xf32> to vector<32xf32>
    %2 = vector.shape_cast %1 : vector<32xf32> to vector<1x32xf32>
    %cst_1 = arith.constant 6.400000e+01 : f32
    %3 = vector.broadcast %cst_1 : f32 to vector<1x32xf32>
    %4 = arith.divf %2, %3 : vector<1x32xf32>
    %5 = vector.broadcast %4 : vector<1x32xf32> to vector<64x32xf32>
    %6 = arith.subf %0, %5 : vector<64x32xf32>
    %7 = arith.mulf %6, %6 : vector<64x32xf32>
    %cst_2 = arith.constant dense<0.000000e+00> : vector<32xf32>
    %8 = vector.multi_reduction <add>, %7, %cst_2 [0] : vector<64x32xf32> to vector<32xf32>
    %9 = vector.shape_cast %8 : vector<32xf32> to vector<1x32xf32>
    %cst_3 = arith.constant 6.400000e+01 : f32
    %10 = vector.broadcast %cst_3 : f32 to vector<1x32xf32>
    %11 = arith.divf %9, %10 : vector<1x32xf32>
    %c0_4 = arith.constant 0 : index
    %c0_5 = arith.constant 0 : index
    %12 = vector.load %arg2[%c0_4, %c0_5] : memref<1x32xf32, #tpu.memory_space<vmem>>, vector<1x32xf32>
    %cst_6 = arith.constant 9.99999974E-6 : f32
    %13 = vector.broadcast %cst_6 : f32 to vector<1x32xf32>
    %14 = arith.addf %11, %13 : vector<1x32xf32>
    %15 = math.rsqrt %14 : vector<1x32xf32>
    %16 = arith.mulf %12, %15 : vector<1x32xf32>
    %c0_7 = arith.constant 0 : index
    %c0_8 = arith.constant 0 : index
    %17 = vector.load %arg3[%c0_7, %c0_8] : memref<1x32xf32, #tpu.memory_space<vmem>>, vector<1x32xf32>
    %18 = arith.mulf %4, %16 : vector<1x32xf32>
    %19 = arith.subf %17, %18 : vector<1x32xf32>
    %20 = vector.broadcast %16 : vector<1x32xf32> to vector<64x32xf32>
    %21 = arith.mulf %0, %20 : vector<64x32xf32>
    %22 = vector.broadcast %19 : vector<1x32xf32> to vector<64x32xf32>
    %23 = arith.addf %21, %22 : vector<64x32xf32>
    %c0_9 = arith.constant 0 : index
    %c0_10 = arith.constant 0 : index
    %24 = vector.load %arg4[%c0_9, %c0_10] : memref<64x32xf32, #tpu.memory_space<vmem>>, vector<64x32xf32>
    tpu.vector_store %arg4[%c0_9, %c0_10], %23 {strides = array<i32>} : memref<64x32xf32, #tpu.memory_space<vmem>>, vector<64x32xf32>,
    return
  }
  func.func @transform_0(%arg0: i32) -> (i32, i32) {
    %c0_i32 = arith.constant 0 : i32
    %c0_i32_0 = arith.constant 0 : i32
    return %c0_i32, %arg0 : i32, i32
  }
  func.func @transform_1(%arg0: i32) -> (i32, i32) {
    %c0_i32 = arith.constant 0 : i32
    %c0_i32_0 = arith.constant 0 : i32
    return %c0_i32, %arg0 : i32, i32
  }
  func.func @transform_2(%arg0: i32) -> (i32, i32) {
    %c0_i32 = arith.constant 0 : i32
    %c0_i32_0 = arith.constant 0 : i32
    return %c0_i32, %arg0 : i32, i32
  }
  func.func @transform_3(%arg0: i32) -> (i32, i32) {
    %c0_i32 = arith.constant 0 : i32
    %c0_i32_0 = arith.constant 0 : i32
    return %c0_i32, %arg0 : i32, i32
  }
}

</mosaic_0001>

<llo_original>
// kernel: tpu_custom_call.1
$region0: #{tpu_custom_call.1}
  #allocation0 [shape = 'u32[]', space=smem, size = 0x4, offset = 0x4, fixed_abs, tag = 'smem constant byte address 0x4 - core index']
  #allocation1 [shape = 'u32[144,128]{1,0:T(1,128)}', space=vmem, size = 0x12000, scoped, tag = 'internal scratch']
  %s0 = inlined_call_operand.vmem [shape: f32[64,32], index: 0, kind: input, shape index: {}]
  %s1 = inlined_call_operand.vmem [shape: f32[1,32], index: 1, kind: input, shape index: {}]
  %s2 = inlined_call_operand.vmem [shape: f32[1,32], index: 2, kind: input, shape index: {}]
  %s3 = inlined_call_operand.vmem [shape: f32[64,32], index: 3, kind: output, shape index: {}]
  %s4 = sld [smem:[#allocation0]]
  $region22: #{tpu_custom_call.1} parent=0
    _
  %s6 = ssub.s32 1, %s4
  %s7 = scalar_select 0, %s6, %s4
  // Predicated region
  $region2: #{tpu_custom_call.1} parent=0 // pred_check
    _
  $region3: #{tpu_custom_call.1} parent=0 // pred_check_branch
    %9 = sbr.rel (0) target = $region5
  $region4: #{tpu_custom_call.1} parent=0 // pred_region
    _
  $region5: #{tpu_custom_call.1} parent=0 // pred_fallthru
    _
  // Predicated region
  $region6: #{tpu_custom_call.1} parent=0 // pred_check
    _
  $region7: #{tpu_custom_call.1} parent=0 // pred_check_branch
    %11 = sbr.rel (0) target = $region9
  $region8: #{tpu_custom_call.1} parent=0 // pred_region
    _
  $region9: #{tpu_custom_call.1} parent=0 // pred_fallthru
    _
  // Predicated region
  $region10: #{tpu_custom_call.1} parent=0 // pred_check
    _
  $region11: #{tpu_custom_call.1} parent=0 // pred_check_branch
    %13 = sbr.rel (0) target = $region13
  $region12: #{tpu_custom_call.1} parent=0 // pred_region
    _
  $region13: #{tpu_custom_call.1} parent=0 // pred_fallthru
    _
  %v14 = vld [vmem:[%s0] sm:$0xff]
  %v15 = vld [vmem:[%s0 + $0x8] sm:$0xff]
  %v16 = vld [vmem:[%s0 + $0x10] sm:$0xff]
  %v17 = vld [vmem:[%s0 + $0x18] sm:$0xff]
  %v18 = vld [vmem:[%s0 + $0x20] sm:$0xff]
  %v19 = vld [vmem:[%s0 + $0x28] sm:$0xff]
  %v20 = vld [vmem:[%s0 + $0x30] sm:$0xff]
  %v21 = vld [vmem:[%s0 + $0x38] sm:$0xff]
  %vm22 = vcmask 261120
  %v23 = vsel %vm22, %v14, 0.0
  %v24 = vsel %vm22, %v15, 0.0
  %v25 = vadd.f32 %v23, %v24
  %v26 = vsel %vm22, %v16, 0.0
  %v27 = vadd.f32 %v25, %v26
  %v28 = vsel %vm22, %v17, 0.0
  %v29 = vadd.f32 %v27, %v28
  %v30 = vsel %vm22, %v18, 0.0
  %v31 = vadd.f32 %v29, %v30
  %v32 = vsel %vm22, %v19, 0.0
  %v33 = vadd.f32 %v31, %v32
  %v34 = vsel %vm22, %v20, 0.0
  %v35 = vadd.f32 %v33, %v34
  %v36 = vsel %vm22, %v21, 0.0
  %v37 = vadd.f32 %v35, %v36
  %v38 = vrot.slane %v37, 4
  %v39 = vadd.f32 %v37, %v38
  %v40 = vrot.slane %v39, 2
  %v41 = vadd.f32 %v39, %v40
  %v42 = vrot.slane %v41, 1
  %v43 = vadd.f32 %v41, %v42
  %v44 = vrcp.pop 64.0
  %v45 = vmul.f32 %v43, %v44
  %v46 = vsub.f32 %v14, %v45
  %v47 = vsub.f32 %v15, %v45
  %v48 = vsub.f32 %v16, %v45
  %v49 = vsub.f32 %v17, %v45
  %v50 = vsub.f32 %v18, %v45
  %v51 = vsub.f32 %v19, %v45
  %v52 = vsub.f32 %v20, %v45
  %v53 = vsub.f32 %v21, %v45
  %v54 = vmul.f32 %v46, %v46
  %v55 = vmul.f32 %v47, %v47
  %v56 = vmul.f32 %v48, %v48
  %v57 = vmul.f32 %v49, %v49
  %v58 = vmul.f32 %v50, %v50
  %v59 = vmul.f32 %v51, %v51
  %v60 = vmul.f32 %v52, %v52
  %v61 = vmul.f32 %v53, %v53
  %v62 = vsel %vm22, %v54, 0.0
  %v63 = vsel %vm22, %v55, 0.0
  %v64 = vadd.f32 %v62, %v63
  %v65 = vsel %vm22, %v56, 0.0
  %v66 = vadd.f32 %v64, %v65
  %v67 = vsel %vm22, %v57, 0.0
  %v68 = vadd.f32 %v66, %v67
  %v69 = vsel %vm22, %v58, 0.0
  %v70 = vadd.f32 %v68, %v69
  %v71 = vsel %vm22, %v59, 0.0
  %v72 = vadd.f32 %v70, %v71
  %v73 = vsel %vm22, %v60, 0.0
  %v74 = vadd.f32 %v72, %v73
  %v75 = vsel %vm22, %v61, 0.0
  %v76 = vadd.f32 %v74, %v75
  %v77 = vrot.slane %v76, 4
  %v78 = vadd.f32 %v76, %v77
  %v79 = vrot.slane %v78, 2
  %v80 = vadd.f32 %v78, %v79
  %v81 = vrot.slane %v80, 1
  %v82 = vadd.f32 %v80, %v81
  %v83 = vmul.f32 %v82, %v44
  %v84 = vld [vmem:[%s1] sm:$0x1]
  %v85 = vadd.f32 %v83, 1e-05
  %v86 = vrsqrt.pop %v85
  %v87 = vmul.f32 %v84, %v86
  %v88 = vld [vmem:[%s2] sm:$0x1]
  %v89 = vmul.f32 %v45, %v87
  %v90 = vsub.f32 %v88, %v89
  %v92 = vlaneseq
  %v93 = vshrl.u32 %v92, 7
  %v94 = vsub.s32 0, %v93
  %v95 = vrot.slane %v87, %v94
  %v97 = vmul.f32 %v14, %v95
  %v98 = vmul.f32 %v15, %v95
  %v99 = vmul.f32 %v16, %v95
  %v100 = vmul.f32 %v17, %v95
  %v101 = vmul.f32 %v18, %v95
  %v102 = vmul.f32 %v19, %v95
  %v103 = vmul.f32 %v20, %v95
  %v104 = vmul.f32 %v21, %v95
  %v106 = vlaneseq
  %v107 = vshrl.u32 %v106, 7
  %v108 = vsub.s32 0, %v107
  %v109 = vrot.slane %v90, %v108
  %v111 = vadd.f32 %v97, %v109
  %v112 = vadd.f32 %v98, %v109
  %v113 = vadd.f32 %v99, %v109
  %v114 = vadd.f32 %v100, %v109
  %v115 = vadd.f32 %v101, %v109
  %v116 = vadd.f32 %v102, %v109
  %v117 = vadd.f32 %v103, %v109
  %v118 = vadd.f32 %v104, %v109
  %119 = vst.msk [vmem:[%s3] sm:$0xff] %vm22, %v111
  %120 = vst.msk [vmem:[%s3 + $0x8] sm:$0xff] %vm22, %v112
  %121 = vst.msk [vmem:[%s3 + $0x10] sm:$0xff] %vm22, %v113
  %122 = vst.msk [vmem:[%s3 + $0x18] sm:$0xff] %vm22, %v114
  %123 = vst.msk [vmem:[%s3 + $0x20] sm:$0xff] %vm22, %v115
  %124 = vst.msk [vmem:[%s3 + $0x28] sm:$0xff] %vm22, %v116
  %125 = vst.msk [vmem:[%s3 + $0x30] sm:$0xff] %vm22, %v117
  %126 = vst.msk [vmem:[%s3 + $0x38] sm:$0xff] %vm22, %v118
  // Predicated region
  $region14: #{tpu_custom_call.1} parent=0 // pred_check
    _
  $region15: #{tpu_custom_call.1} parent=0 // pred_check_branch
    %128 = sbr.rel (0) target = $region17
  $region16: #{tpu_custom_call.1} parent=0 // pred_region
    _
  $region17: #{tpu_custom_call.1} parent=0 // pred_fallthru
    _
  // Predicated region
  $region18: #{tpu_custom_call.1} parent=0 // pred_check
    _
  $region19: #{tpu_custom_call.1} parent=0 // pred_check_branch
    %130 = sbr.rel (0) target = $region21
  $region20: #{tpu_custom_call.1} parent=0 // pred_region
    _
  $region21: #{tpu_custom_call.1} parent=0 // pred_fallthru
    _

</llo_original>
